<compile_context>
chip_gen: v6e
topology: v6e:2x2x1
jax: 0.10.0
libtpu: 0.0.40
codegen_flags: <defaults>
</compile_context>

<pallas_src>
import jax
import jax.numpy as jnp
from jax.experimental import pallas as pl
from jax.experimental.pallas import tpu as pltpu

F32 = jnp.float32


def _round_up(x, m):
    return ((x + m - 1) // m) * m


def _vmem_capacity_bytes(default=64 * 1024 * 1024):
    """Physical per-core VMEM (64 MiB on v7x, 128 MiB on v5e/v6e); safe fallback."""
    try:
        info = pltpu.get_tpu_info()
    except Exception:
        return default
    for attr in ("vmem_capacity_bytes", "vmem_bytes", "vmem_size_bytes"):
        try:
            v = int(getattr(info, attr))
            if v > 0:
                return v
        except (AttributeError, TypeError, ValueError):
            continue
    return default


# ----------------------- fused GNN branch (per-graph grid) -----------------------

def _make_gnn_kernel(num_layers, inv_f, hcl, lane):
    """Kernel refs: a, (w,b)*num_layers, bnh_scale, bnh_shift, out."""
    def kernel(*refs):
        a_ref = refs[0]
        o_ref = refs[-1]
        sh_ref, th_ref = refs[-3], refs[-2]
        wb = refs[1:1 + 2 * num_layers]

        f = a_ref.shape[1]
        # Parity-only branch (discarded by the model output) -> bf16 MXU inputs.
        a = a_ref[0].astype(jnp.bfloat16)                 # [F, F] normalized adjacency
        ones_row = jnp.ones((1, f), jnp.bfloat16)         # column mean via MXU
        x = None
        means = []
        for l in range(num_layers):
            w = wb[2 * l][...]
            bias = wb[2 * l + 1][...]
            if l == 0:
                xw = w.astype(jnp.bfloat16)               # X == eye(F) -> X @ W == W
            else:
                xw = jnp.dot(x, w.astype(jnp.bfloat16),
                             preferred_element_type=jnp.float32).astype(jnp.bfloat16)
            pre = jnp.dot(a, xw, preferred_element_type=jnp.float32) + bias
            x = jnp.tanh(pre).astype(jnp.bfloat16)        # [F, HC]
            # mean aggregation folded into the conv epilogue (MXU reduction)
            means.append(jnp.dot(ones_row, x, preferred_element_type=jnp.float32) * inv_f)
        if lane > hcl:
            means.append(jnp.zeros((1, lane - hcl), jnp.float32))
        emb = jnp.concatenate(means, axis=1)              # [1, lane] (lane-dense)
        o_ref[0] = emb * sh_ref[...] + th_ref[...]        # bnh (eval affine), pad lanes -> 0
    return kernel


def gnn_branch(a3, conv_ws, conv_bs, bnh, hcl):
    """a3: [B, F, F] per-graph normalized adjacency. Returns [B, hcl]."""
    b, f, _ = a3.shape
    nl = len(conv_ws)
    sh, th = bnh
    lane = sh.shape[1]

    in_specs = [pl.BlockSpec((1, f, f), lambda g: (g, 0, 0))]
    args = [a3]
    for w, bb in zip(conv_ws, conv_bs):
        in_specs.append(pl.BlockSpec(w.shape, lambda g: (0, 0)))
        in_specs.append(pl.BlockSpec(bb.shape, lambda g: (0, 0)))
        args += [w, bb]
    in_specs.append(pl.BlockSpec(sh.shape, lambda g: (0, 0)))
    in_specs.append(pl.BlockSpec(th.shape, lambda g: (0, 0)))
    args += [sh, th]

    out = pl.pallas_call(
        _make_gnn_kernel(nl, 1.0 / f, hcl, lane),
        out_shape=jax.ShapeDtypeStruct((b, 1, lane), F32),
        grid_spec=pltpu.PrefetchScalarGridSpec(
            num_scalar_prefetch=0,
            grid=(b,),
            in_specs=in_specs,
            out_specs=pl.BlockSpec((1, 1, lane), lambda g: (g, 0, 0)),
        ),
        compiler_params=pltpu.CompilerParams(
            dimension_semantics=("parallel",)),
    )(*args)
    return out.reshape(b, lane)[:, :hcl]


# --------------------- fused, K-tiled MLP + LogSoftmax kernel --------------------

def _mlp_kernel(x_ref, w1_ref, b1_ref, w2_ref, b2_ref, w3_ref, b3_ref,
                w4_ref, b4_ref, o_ref, acc_ref):
    k = pl.program_id(0)

    @pl.when(k == 0)
    def _():
        acc_ref[...] = jnp.zeros_like(acc_ref)

    # streaming bf16 x bf16 matmul over the K (tri_dim) reduction, f32 accumulation
    acc_ref[...] += jnp.dot(x_ref[...], w1_ref[...],
                            preferred_element_type=jnp.float32)

    @pl.when(k == pl.num_programs(0) - 1)
    def _():
        # all BatchNorms pre-folded into W*/B*; Dropout is identity in eval mode
        h = jnp.maximum(acc_ref[...] + b1_ref[...], 0.0)
        h = jnp.maximum(
            jnp.dot(h, w2_ref[...], preferred_element_type=jnp.float32) + b2_ref[...], 0.0)
        h = jnp.maximum(
            jnp.dot(h, w3_ref[...], preferred_element_type=jnp.float32) + b3_ref[...], 0.0)
        logits = jnp.dot(h, w4_ref[...], preferred_element_type=jnp.float32) + b4_ref[...]
        # lane-padded classes carry bias -1e30 -> exp() == 0 -> exact log_softmax
        m = jnp.max(logits, axis=-1, keepdims=True)
        z = logits - m
        lse = jnp.log(jnp.sum(jnp.exp(z), axis=-1, keepdims=True))
        o_ref[...] = z - lse


def mlp_logsoftmax(x_tri, mp):
    b, tri = x_tri.shape
    kp, hidden = mp['W1'].shape
    tk = mp['tk']
    lane = mp['lane']
    nk = kp // tk

    # pad the reduction dim once, in bf16 (zero padding + zero W1 rows -> exact)
    x_bf = x_tri.astype(jnp.bfloat16)
    if kp != tri:
        x_bf = jnp.zeros((b, kp), jnp.bfloat16).at[:, :tri].set(x_bf)

    # TODO(synk): on v7x, split the K range across the two TensorCores (leading
    # core-parallel grid axis + per-core partial accumulators + tiny combine
    # epilogue) to stream W1 from both cores; single reduction axis here.
    in_specs = [
        pl.BlockSpec((b, tk), lambda k: (0, k)),            # x tile (bf16)
        pl.BlockSpec((tk, hidden), lambda k: (k, 0)),       # W1 tile (bf16)
        pl.BlockSpec(mp['B1'].shape, lambda k: (0, 0)),
        pl.BlockSpec(mp['W2'].shape, lambda k: (0, 0)),
        pl.BlockSpec(mp['B2'].shape, lambda k: (0, 0)),
        pl.BlockSpec(mp['W3'].shape, lambda k: (0, 0)),
        pl.BlockSpec(mp['B3'].shape, lambda k: (0, 0)),
        pl.BlockSpec(mp['W4'].shape, lambda k: (0, 0)),
        pl.BlockSpec(mp['B4'].shape, lambda k: (0, 0)),
    ]
    out_pad = pl.pallas_call(
        _mlp_kernel,
        out_shape=jax.ShapeDtypeStruct((b, lane), F32),
        grid_spec=pltpu.PrefetchScalarGridSpec(
            num_scalar_prefetch=0,
            grid=(nk,),
            in_specs=in_specs,
            out_specs=pl.BlockSpec((b, lane), lambda k: (0, 0)),
            scratch_shapes=[pltpu.VMEM((b, hidden), jnp.float32)],
        ),
        compiler_params=pltpu.CompilerParams(
            dimension_semantics=("arbitrary",),
            vmem_limit_bytes=mp['vmem_limit']),
    )(x_bf, mp['W1'], mp['B1'], mp['W2'], mp['B2'], mp['W3'], mp['B3'],
      mp['W4'], mp['B4'])
    return out_pad


# -------------------------------- glue / setup -----------------------------------

def build_gcn_adjacency_blocks(edge_index, batchsize, nodes_per_graph):
    """Per-graph D^-1/2 (A+I) D^-1/2 blocks, shape [B, F, F].

    Exploits the block-diagonal structure (edges never cross graphs; nodes of a
    graph are contiguous) instead of materializing the dense [B*F, B*F] matrix.
    """
    src, dst = edge_index
    g = src // nodes_per_graph
    ls = src % nodes_per_graph
    ld = dst % nodes_per_graph
    a = jnp.zeros((batchsize, nodes_per_graph, nodes_per_graph), F32).at[g, ls, ld].set(1.0)
    idx = jnp.arange(nodes_per_graph)
    a = a.at[:, idx, idx].set(1.0)                          # self loops
    deg = jnp.sum(a, axis=2)
    dinv = 1.0 / jnp.sqrt(deg)
    return a * dinv[:, :, None] * dinv[:, None, :]


def init_params(key, num_features, hidden_channels, num_layers, hidden, num_classes,
                max_batch=16, vmem_budget_bytes=None):
    keys = iter(jax.random.split(key, 32))

    def lin(k, din, dout):
        s = 1.0 / jnp.sqrt(jnp.asarray(din, F32))
        w = jax.random.uniform(k, (din, dout), F32, -s, s)
        b = jax.random.uniform(jax.random.fold_in(k, 1), (1, dout), F32, -s, s)
        return w, b

    def bn(k, d):
        gamma = 1.0 + 0.1 * jax.random.normal(jax.random.fold_in(k, 0), (d,), F32)
        beta = 0.1 * jax.random.normal(jax.random.fold_in(k, 1), (d,), F32)
        mean = 0.1 * jax.random.normal(jax.random.fold_in(k, 2), (d,), F32)
        var = jnp.abs(1.0 + 0.1 * jax.random.normal(jax.random.fold_in(k, 3), (d,), F32))
        scale = gamma / jnp.sqrt(var + 1e-5)
        shift = beta - mean * scale
        return scale, shift

    # GNN convs
    conv_ws, conv_bs = [], []
    din = num_features
    for _ in range(num_layers):
        w, b = lin(next(keys), din, hidden_channels)
        conv_ws.append(w)
        conv_bs.append(b)
        din = hidden_channels
    hcl = hidden_channels * num_layers
    gnn_lane = _round_up(max(hcl, 1), 128)
    sh, th = bn(next(keys), hcl)
    sh_p = jnp.zeros((1, gnn_lane), F32).at[0, :hcl].set(sh)
    th_p = jnp.zeros((1, gnn_lane), F32).at[0, :hcl].set(th)
    bnh = (sh_p, th_p)

    # MLP (raw torch-style params)
    tri = num_features * (num_features - 1) // 2
    sx, tx = bn(next(keys), tri)                 # BatchNorm1d on x_tri (eval)
    w1, b1 = lin(next(keys), tri, hidden)
    s1, t1 = bn(next(keys), hidden)
    w2, b2 = lin(next(keys), hidden, hidden // 2)
    s2, t2 = bn(next(keys), hidden // 2)
    w3, b3 = lin(next(keys), hidden // 2, hidden // 2)
    s3, t3 = bn(next(keys), hidden // 2)
    w4, b4 = lin(next(keys), hidden // 2, num_classes)

    # Fold all eval-mode BatchNorms into adjacent Linear weights (exact algebra):
    #   relu(((x*sx+tx) @ w1 + b1)*s1 + t1) == relu(x @ W1 + B1)
    W1 = sx[:, None] * w1 * s1[None, :]
    B1 = ((tx[None, :] @ w1) + b1) * s1[None, :] + t1[None, :]
    W2 = w2 * s2[None, :]
    B2 = b2 * s2[None, :] + t2[None, :]
    W3 = w3 * s3[None, :]
    B3 = b3 * s3[None, :] + t3[None, :]

    # --- K-tile sizing from a per-generation VMEM budget -------------------------
    # Double-buffered streaming tiles (bf16 W1 + bf16 x) must fit the budget;
    # default budget = half of physical per-core VMEM (32 MiB v7x, 64 MiB v5e/v6e).
    cap = _vmem_capacity_bytes()
    if vmem_budget_bytes is None:
        vmem_budget_bytes = cap // 2
    reserve = 2 * 1024 * 1024                     # resident small weights / acc / misc
    per_tk = 2 * hidden * 2 + 2 * max_batch * 2   # bytes per unit of tk (double-buffered)
    tk_cap = max(128, ((vmem_budget_bytes - reserve) // per_tk) // 128 * 128)
    nk = max(1, -(-tri // tk_cap))                # ceil: number of K grid steps
    tk = _round_up(-(-tri // nk), 128)            # minimize zero-padding per step
    kp = nk * tk
    vmem_need = per_tk * tk + reserve
    vmem_limit = int(min(cap, max(32 * 1024 * 1024, vmem_need + 4 * 1024 * 1024)))

    # W1 stored in bf16 (f32 accumulation in-kernel); padded rows are zero -> exact.
    W1p = jnp.zeros((kp, hidden), F32).at[:tri].set(W1).astype(jnp.bfloat16)

    # Lane-dense output: pad class dim to a multiple of 128; padded logits get a
    # -1e30 bias so they contribute exp()==0 to the log_softmax denominator.
    lane = _round_up(max(num_classes, 1), 128)
    W4p = jnp.zeros((hidden // 2, lane), F32).at[:, :num_classes].set(w4)
    B4p = jnp.full((1, lane), -1e30, F32).at[:, :num_classes].set(b4)

    mlp = dict(W1=W1p, B1=B1, W2=W2, B2=B2, W3=W3, B3=B3, W4=W4p, B4=B4p,
               tri=tri, tk=tk, kp=kp, lane=lane, vmem_limit=vmem_limit)
    return dict(conv_ws=conv_ws, conv_bs=conv_bs, bnh=bnh, hcl=hcl, mlp=mlp)


def model3_forward(x, edge_index, batch, params, num_classes, compute_gnn_branch=True):
    num_features = x.shape[-1]
    batchsize = x.shape[0] // num_features      # nodes_per_graph == num_features
    del batch  # nodes are contiguous per graph (block-diagonal assumption)

    # ---- GNN / aggregation / bnh branch (parity: does not feed the output) ----
    if compute_gnn_branch:
        a3 = build_gcn_adjacency_blocks(edge_index, batchsize, num_features)
        _h_gnn = gnn_branch(a3, params['conv_ws'], params['conv_bs'],
                            params['bnh'], params['hcl'])
        # The torch code also builds h = cat([bn(x_tri), h_gnn], dim=1) which is
        # never used by the returned value; bn(x_tri) is folded into W1 here, so
        # that dead concatenation is intentionally skipped.

    # ---- strict upper triangle of raw x per graph ----
    rawx3 = x.reshape(batchsize, num_features, num_features)
    # TODO(synk): torch `.triu().flatten().nonzero()` is data-dependent; with the
    # zero-diagonal connectivity matrices this model assumes, it equals this
    # static strict-upper-triangle gather. (Alternative: scatter W1 to an
    # [F*F, hidden] layout at prep time and skip the gather at 2x W1 bytes.)
    iu, ju = jnp.triu_indices(num_features, k=1)
    x_tri = rawx3[:, iu, ju]                                 # [B, F*(F-1)/2]

    # ---- fused (BN-folded) MLP + LogSoftmax, K-tiled over the reduction ----
    out_pad = mlp_logsoftmax(x_tri, params['mlp'])           # [B, lane]
    return out_pad[:, :num_classes]


# ------------------------------------ main ----------------------------------------

if __name__ == "__main__":
    B = 2      # num_graphs
    F_ = 16    # num_features == nodes per graph (1000 in the original module)
    HC = 32    # hidden_channels
    L = 3      # num_layers  -> HC * L = 96 matches the hardcoded input_dim1
    HID = 32   # mlp hidden
    C = 4      # args.num_classes

    key = jax.random.PRNGKey(0)
    kx, kparam = jax.random.split(key)

    # data.x: [B*F, F] per-graph connectivity-style features with zero diagonal
    x = jax.random.normal(kx, (B * F_, F_), F32)
    x3 = x.reshape(B, F_, F_) * (1.0 - jnp.eye(F_, dtype=F32))[None]
    x = x3.reshape(B * F_, F_)

    # undirected ring graph inside each graph
    src_list, dst_list = [], []
    for g in range(B):
        for i in range(F_):
            a, b = g * F_ + i, g * F_ + (i + 1) % F_
            src_list += [a, b]
            dst_list += [b, a]
    edge_index = jnp.asarray([src_list, dst_list], dtype=jnp.int32)
    batch = jnp.repeat(jnp.arange(B, dtype=jnp.int32), F_)

    params = init_params(kparam, F_, HC, L, HID, C)

    out = model3_forward(x, edge_index, batch, params, num_classes=C)
    out = jax.block_until_ready(out)

    assert out.shape == (B, C), out.shape
    assert bool(jnp.all(jnp.isfinite(out)))
    rowsum = jnp.sum(jnp.exp(out), axis=1)           # log_softmax rows exp-sum to 1
    assert bool(jnp.all(jnp.abs(rowsum - 1.0) < 1e-3))
    print("KERNEL_OK")
</pallas_src>

<mosaic_0001>
module attributes {stable_mosaic.version = 11 : i64} {
  func.func @kernel(%arg0: i32, %arg1: memref<1x16x16xf32, #tpu.memory_space<vmem>>, %arg2: memref<16x32xf32, #tpu.memory_space<vmem>>, %arg3: memref<1x32xf32, #tpu.memory_space<vmem>>, %arg4: memref<32x32xf32, #tpu.memory_space<vmem>>, %arg5: memref<1x32xf32, #tpu.memory_space<vmem>>, %arg6: memref<32x32xf32, #tpu.memory_space<vmem>>, %arg7: memref<1x32xf32, #tpu.memory_space<vmem>>, %arg8: memref<1x128xf32, #tpu.memory_space<vmem>>, %arg9: memref<1x128xf32, #tpu.memory_space<vmem>>, %arg10: memref<1x1x128xf32, #tpu.memory_space<vmem>>) attributes {dimension_semantics = [#tpu.dimension_semantics<parallel>], iteration_bounds = array<i64: 2>, scalar_prefetch = 0 : i64, scratch_operands = 0 : i64, tpu.core_type = #tpu.core_type<tc>, window_params = [{transform_indices = @transform_0, window_bounds = array<i64: 1, 16, 16>}, {pipeline_mode = #tpu.pipeline_mode<synchronous>, transform_indices = @transform_1, window_bounds = array<i64: 16, 32>}, {pipeline_mode = #tpu.pipeline_mode<synchronous>, transform_indices = @transform_2, window_bounds = array<i64: 1, 32>}, {pipeline_mode = #tpu.pipeline_mode<synchronous>, transform_indices = @transform_3, window_bounds = array<i64: 32, 32>}, {pipeline_mode = #tpu.pipeline_mode<synchronous>, transform_indices = @transform_4, window_bounds = array<i64: 1, 32>}, {pipeline_mode = #tpu.pipeline_mode<synchronous>, transform_indices = @transform_5, window_bounds = array<i64: 32, 32>}, {pipeline_mode = #tpu.pipeline_mode<synchronous>, transform_indices = @transform_6, window_bounds = array<i64: 1, 32>}, {pipeline_mode = #tpu.pipeline_mode<synchronous>, transform_indices = @transform_7, window_bounds = array<i64: 1, 128>}, {pipeline_mode = #tpu.pipeline_mode<synchronous>, transform_indices = @transform_8, window_bounds = array<i64: 1, 128>}, {transform_indices = @transform_9, window_bounds = array<i64: 1, 1, 128>}]} {
    %c0 = arith.constant 0 : index
    %c0_0 = arith.constant 0 : index
    %c0_1 = arith.constant 0 : index
    %0 = vector.load %arg1[%c0, %c0_0, %c0_1] : memref<1x16x16xf32, #tpu.memory_space<vmem>>, vector<1x16x16xf32>
    %1 = vector.shape_cast %0 : vector<1x16x16xf32> to vector<16x16xf32>
    %2 = arith.truncf %1 : vector<16x16xf32> to vector<16x16xbf16>
    %cst = arith.constant 1.000000e+00 : bf16
    %3 = vector.broadcast %cst : bf16 to vector<1x16xbf16>
    %c0_2 = arith.constant 0 : index
    %c0_3 = arith.constant 0 : index
    %4 = vector.load %arg2[%c0_2, %c0_3] : memref<16x32xf32, #tpu.memory_space<vmem>>, vector<16x32xf32>
    %c0_4 = arith.constant 0 : index
    %c0_5 = arith.constant 0 : index
    %5 = vector.load %arg3[%c0_4, %c0_5] : memref<1x32xf32, #tpu.memory_space<vmem>>, vector<1x32xf32>
    %6 = arith.truncf %4 : vector<16x32xf32> to vector<16x32xbf16>
    %cst_6 = arith.constant dense<0.000000e+00> : vector<16x32xf32>
    %7 = tpu.matmul %2, %6, %cst_6 {dimension_numbers = #tpu.dot_dimension_numbers<[1], [0], [0], [1], [0, 0, 1, 1], [], []>} : vector<16x16xbf16>, vector<16x32xbf16>, vector<16x32xf32> -> vector<16x32xf32>
    %8 = vector.broadcast %5 : vector<1x32xf32> to vector<16x32xf32>
    %9 = arith.addf %7, %8 : vector<16x32xf32>
    %10 = math.tanh %9 : vector<16x32xf32>
    %11 = arith.truncf %10 : vector<16x32xf32> to vector<16x32xbf16>
    %cst_7 = arith.constant dense<0.000000e+00> : vector<1x32xf32>
    %12 = tpu.matmul %3, %11, %cst_7 {dimension_numbers = #tpu.dot_dimension_numbers<[1], [0], [0], [1], [0, 0, 1, 1], [], []>} : vector<1x16xbf16>, vector<16x32xbf16>, vector<1x32xf32> -> vector<1x32xf32>
    %cst_8 = arith.constant 6.250000e-02 : f32
    %13 = vector.broadcast %cst_8 : f32 to vector<1x32xf32>
    %14 = arith.mulf %12, %13 : vector<1x32xf32>
    %c0_9 = arith.constant 0 : index
    %c0_10 = arith.constant 0 : index
    %15 = vector.load %arg4[%c0_9, %c0_10] : memref<32x32xf32, #tpu.memory_space<vmem>>, vector<32x32xf32>
    %c0_11 = arith.constant 0 : index
    %c0_12 = arith.constant 0 : index
    %16 = vector.load %arg5[%c0_11, %c0_12] : memref<1x32xf32, #tpu.memory_space<vmem>>, vector<1x32xf32>
    %17 = arith.truncf %15 : vector<32x32xf32> to vector<32x32xbf16>
    %cst_13 = arith.constant dense<0.000000e+00> : vector<16x32xf32>
    %18 = tpu.matmul %11, %17, %cst_13 {dimension_numbers = #tpu.dot_dimension_numbers<[1], [0], [0], [1], [0, 0, 1, 1], [], []>} : vector<16x32xbf16>, vector<32x32xbf16>, vector<16x32xf32> -> vector<16x32xf32>
    %19 = arith.truncf %18 : vector<16x32xf32> to vector<16x32xbf16>
    %cst_14 = arith.constant dense<0.000000e+00> : vector<16x32xf32>
    %20 = tpu.matmul %2, %19, %cst_14 {dimension_numbers = #tpu.dot_dimension_numbers<[1], [0], [0], [1], [0, 0, 1, 1], [], []>} : vector<16x16xbf16>, vector<16x32xbf16>, vector<16x32xf32> -> vector<16x32xf32>
    %21 = vector.broadcast %16 : vector<1x32xf32> to vector<16x32xf32>
    %22 = arith.addf %20, %21 : vector<16x32xf32>
    %23 = math.tanh %22 : vector<16x32xf32>
    %24 = arith.truncf %23 : vector<16x32xf32> to vector<16x32xbf16>
    %cst_15 = arith.constant dense<0.000000e+00> : vector<1x32xf32>
    %25 = tpu.matmul %3, %24, %cst_15 {dimension_numbers = #tpu.dot_dimension_numbers<[1], [0], [0], [1], [0, 0, 1, 1], [], []>} : vector<1x16xbf16>, vector<16x32xbf16>, vector<1x32xf32> -> vector<1x32xf32>
    %cst_16 = arith.constant 6.250000e-02 : f32
    %26 = vector.broadcast %cst_16 : f32 to vector<1x32xf32>
    %27 = arith.mulf %25, %26 : vector<1x32xf32>
    %c0_17 = arith.constant 0 : index
    %c0_18 = arith.constant 0 : index
    %28 = vector.load %arg6[%c0_17, %c0_18] : memref<32x32xf32, #tpu.memory_space<vmem>>, vector<32x32xf32>
    %c0_19 = arith.constant 0 : index
    %c0_20 = arith.constant 0 : index
    %29 = vector.load %arg7[%c0_19, %c0_20] : memref<1x32xf32, #tpu.memory_space<vmem>>, vector<1x32xf32>
    %30 = arith.truncf %28 : vector<32x32xf32> to vector<32x32xbf16>
    %cst_21 = arith.constant dense<0.000000e+00> : vector<16x32xf32>
    %31 = tpu.matmul %24, %30, %cst_21 {dimension_numbers = #tpu.dot_dimension_numbers<[1], [0], [0], [1], [0, 0, 1, 1], [], []>} : vector<16x32xbf16>, vector<32x32xbf16>, vector<16x32xf32> -> vector<16x32xf32>
    %32 = arith.truncf %31 : vector<16x32xf32> to vector<16x32xbf16>
    %cst_22 = arith.constant dense<0.000000e+00> : vector<16x32xf32>
    %33 = tpu.matmul %2, %32, %cst_22 {dimension_numbers = #tpu.dot_dimension_numbers<[1], [0], [0], [1], [0, 0, 1, 1], [], []>} : vector<16x16xbf16>, vector<16x32xbf16>, vector<16x32xf32> -> vector<16x32xf32>
    %34 = vector.broadcast %29 : vector<1x32xf32> to vector<16x32xf32>
    %35 = arith.addf %33, %34 : vector<16x32xf32>
    %36 = math.tanh %35 : vector<16x32xf32>
    %37 = arith.truncf %36 : vector<16x32xf32> to vector<16x32xbf16>
    %cst_23 = arith.constant dense<0.000000e+00> : vector<1x32xf32>
    %38 = tpu.matmul %3, %37, %cst_23 {dimension_numbers = #tpu.dot_dimension_numbers<[1], [0], [0], [1], [0, 0, 1, 1], [], []>} : vector<1x16xbf16>, vector<16x32xbf16>, vector<1x32xf32> -> vector<1x32xf32>
    %cst_24 = arith.constant 6.250000e-02 : f32
    %39 = vector.broadcast %cst_24 : f32 to vector<1x32xf32>
    %40 = arith.mulf %38, %39 : vector<1x32xf32>
    %cst_25 = arith.constant 0.000000e+00 : f32
    %41 = vector.broadcast %cst_25 : f32 to vector<1x32xf32>
    %42 = tpu.concatenate %14, %27, %40, %41 in 1 : vector<1x32xf32>, vector<1x32xf32>, vector<1x32xf32>, vector<1x32xf32> -> vector<1x128xf32>
    %c0_26 = arith.constant 0 : index
    %c0_27 = arith.constant 0 : index
    %43 = vector.load %arg8[%c0_26, %c0_27] : memref<1x128xf32, #tpu.memory_space<vmem>>, vector<1x128xf32>
    %44 = arith.mulf %42, %43 : vector<1x128xf32>
    %c0_28 = arith.constant 0 : index
    %c0_29 = arith.constant 0 : index
    %45 = vector.load %arg9[%c0_28, %c0_29] : memref<1x128xf32, #tpu.memory_space<vmem>>, vector<1x128xf32>
    %46 = arith.addf %44, %45 : vector<1x128xf32>
    %c0_30 = arith.constant 0 : index
    %c0_31 = arith.constant 0 : index
    %c0_32 = arith.constant 0 : index
    %47 = vector.load %arg10[%c0_30, %c0_31, %c0_32] : memref<1x1x128xf32, #tpu.memory_space<vmem>>, vector<1x1x128xf32>
    %48 = vector.shape_cast %47 : vector<1x1x128xf32> to vector<1x128xf32>
    %49 = vector.shape_cast %46 : vector<1x128xf32> to vector<1x1x128xf32>
    tpu.vector_store %arg10[%c0_30, %c0_31, %c0_32], %49 {strides = array<i32>} : memref<1x1x128xf32, #tpu.memory_space<vmem>>, vector<1x1x128xf32>,
    return
  }
  func.func @transform_0(%arg0: i32) -> (i32, i32, i32) {
    %c0_i32 = arith.constant 0 : i32
    %c0_i32_0 = arith.constant 0 : i32
    %c0_i32_1 = arith.constant 0 : i32
    return %arg0, %c0_i32, %c0_i32_0 : i32, i32, i32
  }
  func.func @transform_1(%arg0: i32) -> (i32, i32) {
    %c0_i32 = arith.constant 0 : i32
    %c0_i32_0 = arith.constant 0 : i32
    %c0_i32_1 = arith.constant 0 : i32
    return %c0_i32, %c0_i32_0 : i32, i32
  }
  func.func @transform_2(%arg0: i32) -> (i32, i32) {
    %c0_i32 = arith.constant 0 : i32
    %c0_i32_0 = arith.constant 0 : i32
    %c0_i32_1 = arith.constant 0 : i32
    return %c0_i32, %c0_i32_0 : i32, i32
  }
  func.func @transform_3(%arg0: i32) -> (i32, i32) {
    %c0_i32 = arith.constant 0 : i32
    %c0_i32_0 = arith.constant 0 : i32
    %c0_i32_1 = arith.constant 0 : i32
    return %c0_i32, %c0_i32_0 : i32, i32
  }
  func.func @transform_4(%arg0: i32) -> (i32, i32) {
    %c0_i32 = arith.constant 0 : i32
    %c0_i32_0 = arith.constant 0 : i32
    %c0_i32_1 = arith.constant 0 : i32
    return %c0_i32, %c0_i32_0 : i32, i32
  }
  func.func @transform_5(%arg0: i32) -> (i32, i32) {
    %c0_i32 = arith.constant 0 : i32
    %c0_i32_0 = arith.constant 0 : i32
    %c0_i32_1 = arith.constant 0 : i32
    return %c0_i32, %c0_i32_0 : i32, i32
  }
  func.func @transform_6(%arg0: i32) -> (i32, i32) {
    %c0_i32 = arith.constant 0 : i32
    %c0_i32_0 = arith.constant 0 : i32
    %c0_i32_1 = arith.constant 0 : i32
    return %c0_i32, %c0_i32_0 : i32, i32
  }
  func.func @transform_7(%arg0: i32) -> (i32, i32) {
    %c0_i32 = arith.constant 0 : i32
    %c0_i32_0 = arith.constant 0 : i32
    %c0_i32_1 = arith.constant 0 : i32
    return %c0_i32, %c0_i32_0 : i32, i32
  }
  func.func @transform_8(%arg0: i32) -> (i32, i32) {
    %c0_i32 = arith.constant 0 : i32
    %c0_i32_0 = arith.constant 0 : i32
    %c0_i32_1 = arith.constant 0 : i32
    return %c0_i32, %c0_i32_0 : i32, i32
  }
  func.func @transform_9(%arg0: i32) -> (i32, i32, i32) {
    %c0_i32 = arith.constant 0 : i32
    %c0_i32_0 = arith.constant 0 : i32
    %c0_i32_1 = arith.constant 0 : i32
    return %arg0, %c0_i32, %c0_i32_0 : i32, i32, i32
  }
}

</mosaic_0001>

<llo_original>
// kernel: tpu_custom_call.1
$region0: #{tpu_custom_call.1}
  #allocation0 [shape = 'u32[]', space=smem, size = 0x4, offset = 0x4, fixed_abs, tag = 'smem constant byte address 0x4 - core index']
  #allocation1 [shape = 'u32[144,128]{1,0:T(1,128)}', space=vmem, size = 0x12000, scoped, tag = 'internal scratch']
  %s0 = inlined_call_operand.hbm [shape: f32[2,16,16], index: 0, kind: input, shape index: {}]
  %s1 = inlined_call_operand.hbm [shape: f32[16,32], index: 1, kind: input, shape index: {}]
  %s2 = inlined_call_operand.vmem [shape: f32[1,32], index: 2, kind: input, shape index: {}]
  %s3 = inlined_call_operand.hbm [shape: f32[32,32], index: 3, kind: input, shape index: {}]
  %s4 = inlined_call_operand.vmem [shape: f32[1,32], index: 4, kind: input, shape index: {}]
  %s5 = inlined_call_operand.hbm [shape: f32[32,32], index: 5, kind: input, shape index: {}]
  %s6 = inlined_call_operand.vmem [shape: f32[1,32], index: 6, kind: input, shape index: {}]
  %s7 = inlined_call_operand.vmem [shape: f32[1,128], index: 7, kind: input, shape index: {}]
  %s8 = inlined_call_operand.vmem [shape: f32[1,128], index: 8, kind: input, shape index: {}]
  %s9 = inlined_call_operand.hbm [shape: f32[2,1,128], index: 9, kind: output, shape index: {}]
  %s10 = sld [smem:[#allocation0]]
  $region85: #{tpu_custom_call.1} parent=0
    _
  %s12 = ssub.s32 1, %s10
  %s13 = scalar_select 0, %s12, %s10
  $region1: #{tpu_custom_call.1} parent=0
    #allocation2 [shape = 'u8[16384]{0}', space=vmem, size = 0x4000, scoped, tag = 'input window, operand 0']
    #allocation3 [shape = 's32[2]{0}', space=sflag, size = 0x8, scoped, tag = 'scoped memory for tpu_custom_call.1']
    #allocation4 [shape = 's32[2]{0}', space=sflag, size = 0x8, scoped, tag = 'scoped memory for tpu_custom_call.1']
    #allocation5 [shape = 'u8[8192]{0}', space=vmem, size = 0x2000, scoped, tag = 'input window, operand 1, single buffered']
    #allocation6 [shape = 's32[1]{0}', space=sflag, size = 0x4, scoped, tag = 'scoped memory for tpu_custom_call.1']
    #allocation7 [shape = 'u8[16384]{0}', space=vmem, size = 0x4000, scoped, tag = 'input window, operand 3, single buffered']
    #allocation8 [shape = 'u8[16384]{0}', space=vmem, size = 0x4000, scoped, tag = 'input window, operand 5, single buffered']
    #allocation9 [shape = 's32[1]{0}', space=sflag, size = 0x4, scoped, tag = 'scoped memory for tpu_custom_call.1']
    #allocation10 [shape = 'u8[1024]{0}', space=vmem, size = 0x400, scoped, tag = 'output window, operand 0']
    %14 = vsyncpa [#allocation3], 0
    %s15 = scalar_lea.sflag [#allocation3], 1
    %16 = vsyncpa %s15, 0
    %17 = vsyncpa [#allocation6], 0
    %18 = vsyncpa [#allocation9], 0
    %19 = vsyncpa [#allocation4], 0
    %s20 = scalar_lea.sflag [#allocation4], 1
    %21 = vsyncpa %s20, 0
    loop: start=0, step=1, limit=4
    $region2: #{tpu_custom_call.1} parent=1 // loop_pre_header
      _
    $region3: #{tpu_custom_call.1} parent=1 // loop_header
      %s23 = sphi 0, %s27
      %p24 = scmp.ge.s32.totalorder %s23, 4
      %s33 = sphi 0, %s35
      %s36 = sphi 0, %s33
      %s37 = sphi 0, %s36
      %s53 = sphi 0, %s37
      %s57 = sphi 0, %s57
      %s59 = sphi 0, %s57
      %s60 = sphi 0, %s59
      %s74 = sphi 0, %s60
      %s78 = sphi 0, %s78
      %s80 = sphi 0, %s78
      %s81 = sphi 0, %s80
      %s95 = sphi 0, %s81
      %s99 = sphi 0, %s99
      %s101 = sphi 0, %s99
      %s102 = sphi 0, %s101
      %s116 = sphi 0, %s102
      %s120 = sphi 0, %s120
      %s122 = sphi 0, %s120
      %s123 = sphi 0, %s122
      %s137 = sphi 0, %s123
      %s141 = sphi 0, %s141
      %s143 = sphi 0, %s141
      %s144 = sphi 0, %s143
      %s158 = sphi 0, %s144
      %s162 = sphi 0, %s162
      %s164 = sphi 0, %s162
      %s165 = sphi 0, %s164
      %s179 = sphi 0, %s165
      %s183 = sphi 0, %s183
      %s185 = sphi 0, %s183
      %s186 = sphi 0, %s185
      %s200 = sphi 0, %s186
      %s204 = sphi 0, %s204
      %s206 = sphi 0, %s204
      %s207 = sphi 0, %s206
      %s221 = sphi 0, %s207
      %s227 = sphi 0, %s229
      %s230 = sphi 0, %s227
      %s231 = sphi 0, %s230
      %s247 = sphi 0, %s231
    $region4: #{tpu_custom_call.1} parent=1 // loop_header_branch
      %26 = sbr.rel (%p24) target = $region8
    $region5: #{tpu_custom_call.1} parent=1 // loop_body
      %s28 = ssub.s32 %s23, 1
      %s29 = ssub.s32 %s23, 2
      %s30 = sadd.s32 %s23, 1
      %s31 = ssub.s32 %s23, %s30
      %p32 = scmp.eq.s32.totalorder %s31, 0
      %s34 = sadd.s32 %s33, 1
      %s35 = scalar_select %p32, %s33, %s34
      %p38 = pneg %p32
      %p39 = scmp.eq.s32.totalorder %s23, 1
      %p40 = por %p38, %p39
      %p41 = scmp.ne.s32.totalorder %s33, %s36
      %p42 = scmp.eq.s32.totalorder %s23, 0
      %p43 = por %p41, %p42
      %p44 = scmp.ne.s32.totalorder %s33, %s36
      %p45 = scmp.eq.s32.totalorder %s28, 1
      %p46 = por %p44, %p45
      %p47 = scmp.ne.s32.totalorder %s36, %s37
      %p48 = scmp.eq.s32.totalorder %s28, 0
      %p49 = por %p47, %p48
      %p50 = scmp.ne.s32.totalorder %s36, %s37
      %p51 = scmp.eq.s32.totalorder %s29, 1
      %p52 = por %p50, %p51
      %p54 = scmp.ne.s32.totalorder %s37, %s53
      %p55 = scmp.eq.s32.totalorder %s29, 0
      %p56 = por %p54, %p55
      %s58 = sadd.s32 %s57, 1
      %p61 = scmp.eq.s32.totalorder %s23, 1
      %p62 = scmp.ne.s32.totalorder %s57, %s59
      %p63 = scmp.eq.s32.totalorder %s23, 0
      %p64 = por %p62, %p63
      %p65 = scmp.ne.s32.totalorder %s57, %s59
      %p66 = scmp.eq.s32.totalorder %s28, 1
      %p67 = por %p65, %p66
      %p68 = scmp.ne.s32.totalorder %s59, %s60
      %p69 = scmp.eq.s32.totalorder %s28, 0
      %p70 = por %p68, %p69
      %p71 = scmp.ne.s32.totalorder %s59, %s60
      %p72 = scmp.eq.s32.totalorder %s29, 1
      %p73 = por %p71, %p72
      %p75 = scmp.ne.s32.totalorder %s60, %s74
      %p76 = scmp.eq.s32.totalorder %s29, 0
      %p77 = por %p75, %p76
      %s79 = sadd.s32 %s78, 1
      %p82 = scmp.eq.s32.totalorder %s23, 1
      %p83 = scmp.ne.s32.totalorder %s78, %s80
      %p84 = scmp.eq.s32.totalorder %s23, 0
      %p85 = por %p83, %p84
      %p86 = scmp.ne.s32.totalorder %s78, %s80
      %p87 = scmp.eq.s32.totalorder %s28, 1
      %p88 = por %p86, %p87
      %p89 = scmp.ne.s32.totalorder %s80, %s81
      %p90 = scmp.eq.s32.totalorder %s28, 0
      %p91 = por %p89, %p90
      %p92 = scmp.ne.s32.totalorder %s80, %s81
      %p93 = scmp.eq.s32.totalorder %s29, 1
      %p94 = por %p92, %p93
      %p96 = scmp.ne.s32.totalorder %s81, %s95
      %p97 = scmp.eq.s32.totalorder %s29, 0
      %p98 = por %p96, %p97
      %s100 = sadd.s32 %s99, 1
      %p103 = scmp.eq.s32.totalorder %s23, 1
      %p104 = scmp.ne.s32.totalorder %s99, %s101
      %p105 = scmp.eq.s32.totalorder %s23, 0
      %p106 = por %p104, %p105
      %p107 = scmp.ne.s32.totalorder %s99, %s101
      %p108 = scmp.eq.s32.totalorder %s28, 1
      %p109 = por %p107, %p108
      %p110 = scmp.ne.s32.totalorder %s101, %s102
      %p111 = scmp.eq.s32.totalorder %s28, 0
      %p112 = por %p110, %p111
      %p113 = scmp.ne.s32.totalorder %s101, %s102
      %p114 = scmp.eq.s32.totalorder %s29, 1
      %p115 = por %p113, %p114
      %p117 = scmp.ne.s32.totalorder %s102, %s116
      %p118 = scmp.eq.s32.totalorder %s29, 0
      %p119 = por %p117, %p118
      %s121 = sadd.s32 %s120, 1
      %p124 = scmp.eq.s32.totalorder %s23, 1
      %p125 = scmp.ne.s32.totalorder %s120, %s122
      %p126 = scmp.eq.s32.totalorder %s23, 0
      %p127 = por %p125, %p126
      %p128 = scmp.ne.s32.totalorder %s120, %s122
      %p129 = scmp.eq.s32.totalorder %s28, 1
      %p130 = por %p128, %p129
      %p131 = scmp.ne.s32.totalorder %s122, %s123
      %p132 = scmp.eq.s32.totalorder %s28, 0
      %p133 = por %p131, %p132
      %p134 = scmp.ne.s32.totalorder %s122, %s123
      %p135 = scmp.eq.s32.totalorder %s29, 1
      %p136 = por %p134, %p135
      %p138 = scmp.ne.s32.totalorder %s123, %s137
      %p139 = scmp.eq.s32.totalorder %s29, 0
      %p140 = por %p138, %p139
      %s142 = sadd.s32 %s141, 1
      %p145 = scmp.eq.s32.totalorder %s23, 1
      %p146 = scmp.ne.s32.totalorder %s141, %s143
      %p147 = scmp.eq.s32.totalorder %s23, 0
      %p148 = por %p146, %p147
      %p149 = scmp.ne.s32.totalorder %s141, %s143
      %p150 = scmp.eq.s32.totalorder %s28, 1
      %p151 = por %p149, %p150
      %p152 = scmp.ne.s32.totalorder %s143, %s144
      %p153 = scmp.eq.s32.totalorder %s28, 0
      %p154 = por %p152, %p153
      %p155 = scmp.ne.s32.totalorder %s143, %s144
      %p156 = scmp.eq.s32.totalorder %s29, 1
      %p157 = por %p155, %p156
      %p159 = scmp.ne.s32.totalorder %s144, %s158
      %p160 = scmp.eq.s32.totalorder %s29, 0
      %p161 = por %p159, %p160
      %s163 = sadd.s32 %s162, 1
      %p166 = scmp.eq.s32.totalorder %s23, 1
      %p167 = scmp.ne.s32.totalorder %s162, %s164
      %p168 = scmp.eq.s32.totalorder %s23, 0
      %p169 = por %p167, %p168
      %p170 = scmp.ne.s32.totalorder %s162, %s164
      %p171 = scmp.eq.s32.totalorder %s28, 1
      %p172 = por %p170, %p171
      %p173 = scmp.ne.s32.totalorder %s164, %s165
      %p174 = scmp.eq.s32.totalorder %s28, 0
      %p175 = por %p173, %p174
      %p176 = scmp.ne.s32.totalorder %s164, %s165
      %p177 = scmp.eq.s32.totalorder %s29, 1
      %p178 = por %p176, %p177
      %p180 = scmp.ne.s32.totalorder %s165, %s179
      %p181 = scmp.eq.s32.totalorder %s29, 0
      %p182 = por %p180, %p181
      %s184 = sadd.s32 %s183, 1
      %p187 = scmp.eq.s32.totalorder %s23, 1
      %p188 = scmp.ne.s32.totalorder %s183, %s185
      %p189 = scmp.eq.s32.totalorder %s23, 0
      %p190 = por %p188, %p189
      %p191 = scmp.ne.s32.totalorder %s183, %s185
      %p192 = scmp.eq.s32.totalorder %s28, 1
      %p193 = por %p191, %p192
      %p194 = scmp.ne.s32.totalorder %s185, %s186
      %p195 = scmp.eq.s32.totalorder %s28, 0
      %p196 = por %p194, %p195
      %p197 = scmp.ne.s32.totalorder %s185, %s186
      %p198 = scmp.eq.s32.totalorder %s29, 1
      %p199 = por %p197, %p198
      %p201 = scmp.ne.s32.totalorder %s186, %s200
      %p202 = scmp.eq.s32.totalorder %s29, 0
      %p203 = por %p201, %p202
      %s205 = sadd.s32 %s204, 1
      %p208 = scmp.eq.s32.totalorder %s23, 1
      %p209 = scmp.ne.s32.totalorder %s204, %s206
      %p210 = scmp.eq.s32.totalorder %s23, 0
      %p211 = por %p209, %p210
      %p212 = scmp.ne.s32.totalorder %s204, %s206
      %p213 = scmp.eq.s32.totalorder %s28, 1
      %p214 = por %p212, %p213
      %p215 = scmp.ne.s32.totalorder %s206, %s207
      %p216 = scmp.eq.s32.totalorder %s28, 0
      %p217 = por %p215, %p216
      %p218 = scmp.ne.s32.totalorder %s206, %s207
      %p219 = scmp.eq.s32.totalorder %s29, 1
      %p220 = por %p218, %p219
      %p222 = scmp.ne.s32.totalorder %s207, %s221
      %p223 = scmp.eq.s32.totalorder %s29, 0
      %p224 = por %p222, %p223
      %s225 = ssub.s32 %s23, %s30
      %p226 = scmp.eq.s32.totalorder %s225, 0
      %s228 = sadd.s32 %s227, 1
      %s229 = scalar_select %p226, %s227, %s228
      %p232 = pneg %p226
      %p233 = scmp.eq.s32.totalorder %s23, 1
      %p234 = por %p232, %p233
      %p235 = scmp.ne.s32.totalorder %s227, %s230
      %p236 = scmp.eq.s32.totalorder %s23, 0
      %p237 = por %p235, %p236
      %p238 = scmp.ne.s32.totalorder %s227, %s230
      %p239 = scmp.eq.s32.totalorder %s28, 1
      %p240 = por %p238, %p239
      %p241 = scmp.ne.s32.totalorder %s230, %s231
      %p242 = scmp.eq.s32.totalorder %s28, 0
      %p243 = por %p241, %p242
      %p244 = scmp.ne.s32.totalorder %s230, %s231
      %p245 = scmp.eq.s32.totalorder %s29, 1
      %p246 = por %p244, %p245
      %p248 = scmp.ne.s32.totalorder %s231, %s247
      %p249 = scmp.eq.s32.totalorder %s29, 0
      %p250 = por %p248, %p249
      %p251 = scmp.le.s32.totalorder 1, %s23
      %p252 = scmp.lt.s32.totalorder %s23, 3
      %p253 = pnand %p251, %p252
      %p254 = pneg %p253
      // Predicated region
      $region9: #{tpu_custom_call.1} parent=5 // pred_check
        _
      $region10: #{tpu_custom_call.1} parent=5 // pred_check_branch
        %256 = sbr.rel (%p253) target = $region12
      $region11: #{tpu_custom_call.1} parent=5 // pred_region
        %s257 = ssub.s32 %s23, 1
        // Predicated region
        $region13: #{tpu_custom_call.1} parent=11 // pred_check
          %p258 = pneg %p70
        $region14: #{tpu_custom_call.1} parent=11 // pred_check_branch
          %260 = sbr.rel (%p258) target = $region16
        $region15: #{tpu_custom_call.1} parent=11 // pred_region
          %s262 = ssub.s32 256, 256
          %263 = vsyncadd [#allocation6], %s262
          %s264 = sshll.u32 [#allocation5], 4
          %s265 = int_to_ptr.vmem [resolvable:$true] %s264
          %270 = dma.hbm_to_vmem [thread:$0]  %s1, 256, %s265, [#allocation6], 128, 128, 8
        $region16: #{tpu_custom_call.1} parent=11 // pred_fallthru
          _
        // Predicated region
        $region17: #{tpu_custom_call.1} parent=11 // pred_check
          %p271 = pneg %p91
        $region18: #{tpu_custom_call.1} parent=11 // pred_check_branch
          %273 = sbr.rel (%p271) target = $region20
        $region19: #{tpu_custom_call.1} parent=11 // pred_region
          _
        $region20: #{tpu_custom_call.1} parent=11 // pred_fallthru
          _
        // Predicated region
        $region21: #{tpu_custom_call.1} parent=11 // pred_check
          %p274 = pneg %p112
        $region22: #{tpu_custom_call.1} parent=11 // pred_check_branch
          %276 = sbr.rel (%p274) target = $region24
        $region23: #{tpu_custom_call.1} parent=11 // pred_region
          %s278 = ssub.s32 512, 512
          %279 = vsyncadd [#allocation6], %s278
          %s280 = sshll.u32 [#allocation7], 4
          %s281 = int_to_ptr.vmem [resolvable:$true] %s280
          %286 = dma.hbm_to_vmem [thread:$0]  %s3, 512, %s281, [#allocation6], 128, 128, 8
        $region24: #{tpu_custom_call.1} parent=11 // pred_fallthru
          _
        // Predicated region
        $region25: #{tpu_custom_call.1} parent=11 // pred_check
          %p287 = pneg %p133
        $region26: #{tpu_custom_call.1} parent=11 // pred_check_branch
          %289 = sbr.rel (%p287) target = $region28
        $region27: #{tpu_custom_call.1} parent=11 // pred_region
          _
        $region28: #{tpu_custom_call.1} parent=11 // pred_fallthru
          _
        // Predicated region
        $region29: #{tpu_custom_call.1} parent=11 // pred_check
          %p290 = pneg %p154
        $region30: #{tpu_custom_call.1} parent=11 // pred_check_branch
          %292 = sbr.rel (%p290) target = $region32
        $region31: #{tpu_custom_call.1} parent=11 // pred_region
          %s294 = ssub.s32 512, 512
          %295 = vsyncadd [#allocation9], %s294
          %s296 = sshll.u32 [#allocation8], 4
          %s297 = int_to_ptr.vmem [resolvable:$true] %s296
          %302 = dma.hbm_to_vmem [thread:$0]  %s5, 512, %s297, [#allocation9], 128, 128, 8
        $region32: #{tpu_custom_call.1} parent=11 // pred_fallthru
          _
        // Predicated region
        $region33: #{tpu_custom_call.1} parent=11 // pred_check
          %p303 = pneg %p175
        $region34: #{tpu_custom_call.1} parent=11 // pred_check_branch
          %305 = sbr.rel (%p303) target = $region36
        $region35: #{tpu_custom_call.1} parent=11 // pred_region
          _
        $region36: #{tpu_custom_call.1} parent=11 // pred_fallthru
          _
        // Predicated region
        $region37: #{tpu_custom_call.1} parent=11 // pred_check
          %p306 = pneg %p196
        $region38: #{tpu_custom_call.1} parent=11 // pred_check_branch
          %308 = sbr.rel (%p306) target = $region40
        $region39: #{tpu_custom_call.1} parent=11 // pred_region
          _
        $region40: #{tpu_custom_call.1} parent=11 // pred_fallthru
          _
        // Predicated region
        $region41: #{tpu_custom_call.1} parent=11 // pred_check
          %p309 = pneg %p217
        $region42: #{tpu_custom_call.1} parent=11 // pred_check_branch
          %311 = sbr.rel (%p309) target = $region44
        $region43: #{tpu_custom_call.1} parent=11 // pred_region
          _
        $region44: #{tpu_custom_call.1} parent=11 // pred_fallthru
          _
      $region12: #{tpu_custom_call.1} parent=5 // pred_fallthru
        _
      %p312 = scmp.lt.s32.totalorder %s23, 2
      // Predicated region
      $region45: #{tpu_custom_call.1} parent=5 // pred_check
        %p313 = pneg %p312
      $region46: #{tpu_custom_call.1} parent=5 // pred_check_branch
        %315 = sbr.rel (%p313) target = $region48
      $region47: #{tpu_custom_call.1} parent=5 // pred_region
        // Predicated region
        $region49: #{tpu_custom_call.1} parent=47 // pred_check
          %p316 = pneg %p43
        $region50: #{tpu_custom_call.1} parent=47 // pred_check_branch
          %318 = sbr.rel (%p316) target = $region52
        $region51: #{tpu_custom_call.1} parent=47 // pred_region
          %s319 = sand.u32 %s33, 1
          %s320 = scalar_lea.sflag [#allocation3], %s319
          %s321 = sand.u32 %s33, 1
          %s322 = smul.addr %s321, 16
          %s323 = scalar_lea.vmem [#allocation2], %s322
          %s325 = ssub.s32 256, 256
          %326 = vsyncadd %s320, %s325
          %s327 = smul.addr %s23, 2
          %s328 = smul.addr %s327, 128
          %s329 = scalar_lea.hbm %s0, %s328
          %s330 = sshll.u32 %s323, 4
          %s331 = int_to_ptr.vmem [resolvable:$true] %s330
          %336 = dma.hbm_to_vmem [thread:$0]  %s329, 256, %s331, %s320, 128, 128, 8
        $region52: #{tpu_custom_call.1} parent=47 // pred_fallthru
          _
      $region48: #{tpu_custom_call.1} parent=5 // pred_fallthru
        _
      %p337 = scmp.le.s32.totalorder 1, %s23
      %p338 = scmp.lt.s32.totalorder %s23, 3
      %p339 = pnand %p337, %p338
      %p340 = pneg %p339
      // Predicated region
      $region53: #{tpu_custom_call.1} parent=5 // pred_check
        _
      $region54: #{tpu_custom_call.1} parent=5 // pred_check_branch
        %342 = sbr.rel (%p339) target = $region56
      $region55: #{tpu_custom_call.1} parent=5 // pred_region
        %s343 = ssub.s32 %s23, 1
        %s344 = sand.u32 %s36, 1
        %s345 = scalar_lea.sflag [#allocation3], %s344
        %s346 = sand.u32 %s36, 1
        %s347 = smul.addr %s346, 16
        %s348 = scalar_lea.vmem [#allocation2], %s347
        // Predicated region
        $region57: #{tpu_custom_call.1} parent=55 // pred_check
          %p349 = pneg %p49
        $region58: #{tpu_custom_call.1} parent=55 // pred_check_branch
          %351 = sbr.rel (%p349) target = $region60
        $region59: #{tpu_custom_call.1} parent=55 // pred_region
          %352 = dma.done %s345, 256
        $region60: #{tpu_custom_call.1} parent=55 // pred_fallthru
          _
        // Predicated region
        $region61: #{tpu_custom_call.1} parent=55 // pred_check
          %p353 = pneg %p70
        $region62: #{tpu_custom_call.1} parent=55 // pred_check_branch
          %355 = sbr.rel (%p353) target = $region64
        $region63: #{tpu_custom_call.1} parent=55 // pred_region
          %356 = dma.done [#allocation6], 256
        $region64: #{tpu_custom_call.1} parent=55 // pred_fallthru
          _
        // Predicated region
        $region65: #{tpu_custom_call.1} parent=55 // pred_check
          %p357 = pneg %p112
        $region66: #{tpu_custom_call.1} parent=55 // pred_check_branch
          %359 = sbr.rel (%p357) target = $region68
        $region67: #{tpu_custom_call.1} parent=55 // pred_region
          %360 = dma.done [#allocation6], 512
        $region68: #{tpu_custom_call.1} parent=55 // pred_fallthru
          _
        // Predicated region
        $region69: #{tpu_custom_call.1} parent=55 // pred_check
          %p361 = pneg %p154
        $region70: #{tpu_custom_call.1} parent=55 // pred_check_branch
          %363 = sbr.rel (%p361) target = $region72
        $region71: #{tpu_custom_call.1} parent=55 // pred_region
          %364 = dma.done [#allocation9], 512
        $region72: #{tpu_custom_call.1} parent=55 // pred_fallthru
          _
        %s365 = sand.u32 %s36, 1
        %s366 = scalar_lea.sflag [#allocation3], %s365
        %s367 = sand.u32 %s36, 1
        %s368 = smul.addr %s367, 16
        %s369 = scalar_lea.vmem [#allocation2], %s368
        %p370 = pneg %p49
        %p371 = pneg %p46
        %p372 = pneg %p70
        %p373 = pneg %p67
        %p374 = pneg %p91
        %p375 = pneg %p88
        %p376 = pneg %p112
        %p377 = pneg %p109
        %p378 = pneg %p133
        %p379 = pneg %p130
        %p380 = pneg %p154
        %p381 = pneg %p151
        %p382 = pneg %p175
        %p383 = pneg %p172
        %p384 = pneg %p196
        %p385 = pneg %p193
        %p386 = pneg %p217
        %p387 = pneg %p214
        %p388 = pneg %p243
        %p389 = pneg %p240
        %s390 = sand.u32 %s230, 1
        %s391 = scalar_lea.sflag [#allocation4], %s390
        %s392 = sand.u32 %s230, 1
        %s393 = scalar_lea.vmem [#allocation10], %s392
        %v396 = vld [vmem:[%s348] sm:$0xff]
        %v397 = vld [vmem:[%s348 + $0x8] sm:$0xff]
        %v398 = vpack.c.bf16 %v397, %v396
        %v399 = vld [vmem:[#allocation5] sm:$0xff]
        %v400 = vld [vmem:[#allocation5 + $0x8] sm:$0xff]
        %v401 = vld [vmem:[%s2] sm:$0x1]
        %v402 = vpack.c.bf16 %v400, %v399
        %v404 = vlaneseq
        %v405 = vshrl.u32 %v404, 7
        %v406 = vsub.s32 0, %v405
        %v407 = vrot.slane %v401, %v406
        %vm409 = vcmask 130048
        %v411 = vsel %vm409, %v398, 0
        %413 = vmatprep.subr.bf16.mxu0 0
        %414 = vmatpush1.bf16.msra.mxu0 0
        %415 = vmatprep.subr.bf16.mxu0 0
        %416 = vmatpush1.bf16.msra.mxu0 0
        %417 = vmatprep.subr.bf16.mxu0 0
        %418 = vmatpush1.bf16.msra.mxu0 0
        %419 = vmatprep.subr.bf16.mxu0 0
        %420 = vmatpush1.bf16.msra.mxu0 0
        %421 = vmatprep.subr.bf16.mxu0 0
        %422 = vmatpush1.bf16.msra.mxu0 0
        %423 = vmatprep.subr.bf16.mxu0 0
        %424 = vmatpush1.bf16.msra.mxu0 0
        %425 = vmatprep.subr.bf16.mxu0 0
        %426 = vmatpush1.bf16.msra.mxu0 0
        %427 = vmatprep.subr.bf16.mxu0 0
        %428 = vmatpush1.bf16.msra.mxu0 %v402
        %429 = vmatprep.subr.bf16.mxu0 0
        %430 = vmatpush2.bf16.msra.mxu0 0
        %431 = vmatprep.subr.bf16.mxu0 0
        %432 = vmatpush2.bf16.msra.mxu0 0
        %433 = vmatprep.subr.bf16.mxu0 0
        %434 = vmatpush2.bf16.msra.mxu0 0
        %435 = vmatprep.subr.bf16.mxu0 0
        %436 = vmatpush2.bf16.msra.mxu0 0
        %437 = vmatprep.subr.bf16.mxu0 0
        %438 = vmatpush2.bf16.msra.mxu0 0
        %439 = vmatprep.subr.bf16.mxu0 0
        %440 = vmatpush2.bf16.msra.mxu0 0
        %441 = vmatprep.subr.bf16.mxu0 0
        %442 = vmatpush2.bf16.msra.mxu0 0
        %443 = vmatprep.subr.bf16.mxu0 0
        %444 = vmatpush2.bf16.msra.mxu0 0
        %445 = vmatprep.mubr.bf16.mxu0 0
        %446 = vmatmul.mubr.bf16.gmra.mxu0 %v411
        %v447 = vpop.f32.mrf.mxu0
        %v448 = vadd.f32 %v407, %v447
        %v449 = vpop.f32.mrf.mxu0
        %v450 = vpop.f32.mrf.mxu0
        %v451 = vadd.f32 %v407, %v450
        %v452 = vpop.f32.mrf.mxu0
        %453 = vdwg.mxu0
        %v454 = vtanh.pop %v448
        %v455 = vtanh.pop %v451
        %v456 = vpack.c.bf16 %v455, %v454
        %v458 = vsel %vm409, 1065369472, 0
        %460 = vmatprep.subr.bf16.mxu0 0
        %461 = vmatpush1.bf16.msra.mxu0 0
        %462 = vmatprep.subr.bf16.mxu0 0
        %463 = vmatpush1.bf16.msra.mxu0 0
        %464 = vmatprep.subr.bf16.mxu0 0
        %465 = vmatpush1.bf16.msra.mxu0 0
        %466 = vmatprep.subr.bf16.mxu0 0
        %467 = vmatpush1.bf16.msra.mxu0 0
        %468 = vmatprep.subr.bf16.mxu0 0
        %469 = vmatpush1.bf16.msra.mxu0 0
        %470 = vmatprep.subr.bf16.mxu0 0
        %471 = vmatpush1.bf16.msra.mxu0 0
        %472 = vmatprep.subr.bf16.mxu0 0
        %473 = vmatpush1.bf16.msra.mxu0 0
        %474 = vmatprep.subr.bf16.mxu0 0
        %475 = vmatpush1.bf16.msra.mxu0 %v456
        %476 = vmatprep.subr.bf16.mxu0 0
        %477 = vmatpush2.bf16.msra.mxu0 0
        %478 = vmatprep.subr.bf16.mxu0 0
        %479 = vmatpush2.bf16.msra.mxu0 0
        %480 = vmatprep.subr.bf16.mxu0 0
        %481 = vmatpush2.bf16.msra.mxu0 0
        %482 = vmatprep.subr.bf16.mxu0 0
        %483 = vmatpush2.bf16.msra.mxu0 0
        %484 = vmatprep.subr.bf16.mxu0 0
        %485 = vmatpush2.bf16.msra.mxu0 0
        %486 = vmatprep.subr.bf16.mxu0 0
        %487 = vmatpush2.bf16.msra.mxu0 0
        %488 = vmatprep.subr.bf16.mxu0 0
        %489 = vmatpush2.bf16.msra.mxu0 0
        %490 = vmatprep.subr.bf16.mxu0 0
        %491 = vmatpush2.bf16.msra.mxu0 0
        %492 = vmatprep.mubr.bf16.mxu0 0
        %493 = vmatmul.mubr.bf16.gmra.mxu0 %v458
        %v494 = vpop.f32.mrf.mxu0
        %v495 = vadd.f32 0.0, %v494
        %v496 = vpop.f32.mrf.mxu0
        %v497 = vpop.f32.mrf.mxu0
        %v498 = vpop.f32.mrf.mxu0
        %499 = vdwg.mxu0
        %v500 = vmul.f32 %v495, 0.0625
        %v501 = vld [vmem:[#allocation7] sm:$0xff]
        %v502 = vld [vmem:[#allocation7 + $0x8] sm:$0xff]
        %v503 = vld [vmem:[#allocation7 + $0x10] sm:$0xff]
        %v504 = vld [vmem:[#allocation7 + $0x18] sm:$0xff]
        %v505 = vld [vmem:[%s4] sm:$0x1]
        %v506 = vpack.c.bf16 %v502, %v501
        %v507 = vpack.c.bf16 %v504, %v503
        %vm508 = vcmask 261120
        %v510 = vsel %vm508, %v456, 0
        %512 = vmatprep.subr.bf16.mxu0 0
        %513 = vmatpush1.bf16.msra.mxu0 0
        %514 = vmatprep.subr.bf16.mxu0 0
        %515 = vmatpush1.bf16.msra.mxu0 0
        %516 = vmatprep.subr.bf16.mxu0 0
        %517 = vmatpush1.bf16.msra.mxu0 0
        %518 = vmatprep.subr.bf16.mxu0 0
        %519 = vmatpush1.bf16.msra.mxu0 0
        %520 = vmatprep.subr.bf16.mxu0 0
        %521 = vmatpush1.bf16.msra.mxu0 0
        %522 = vmatprep.subr.bf16.mxu0 0
        %523 = vmatpush1.bf16.msra.mxu0 0
        %524 = vmatprep.subr.bf16.mxu0 0
        %525 = vmatpush1.bf16.msra.mxu0 %v507
        %526 = vmatprep.subr.bf16.mxu0 0
        %527 = vmatpush1.bf16.msra.mxu0 %v506
        %528 = vmatprep.subr.bf16.mxu0 0
        %529 = vmatpush2.bf16.msra.mxu0 0
        %530 = vmatprep.subr.bf16.mxu0 0
        %531 = vmatpush2.bf16.msra.mxu0 0
        %532 = vmatprep.subr.bf16.mxu0 0
        %533 = vmatpush2.bf16.msra.mxu0 0
        %534 = vmatprep.subr.bf16.mxu0 0
        %535 = vmatpush2.bf16.msra.mxu0 0
        %536 = vmatprep.subr.bf16.mxu0 0
        %537 = vmatpush2.bf16.msra.mxu0 0
        %538 = vmatprep.subr.bf16.mxu0 0
        %539 = vmatpush2.bf16.msra.mxu0 0
        %540 = vmatprep.subr.bf16.mxu0 0
        %541 = vmatpush2.bf16.msra.mxu0 0
        %542 = vmatprep.subr.bf16.mxu0 0
        %543 = vmatpush2.bf16.msra.mxu0 0
        %544 = vmatprep.mubr.bf16.mxu0 0
        %545 = vmatmul.mubr.bf16.gmra.mxu0 %v510
        %v546 = vpop.f32.mrf.mxu0
        %v547 = vadd.f32 0.0, %v546
        %v548 = vpop.f32.mrf.mxu0
        %v549 = vpop.f32.mrf.mxu0
        %v550 = vadd.f32 0.0, %v549
        %v551 = vpop.f32.mrf.mxu0
        %552 = vdwg.mxu0
        %v553 = vpack.c.bf16 %v550, %v547
        %v555 = vlaneseq
        %v556 = vshrl.u32 %v555, 7
        %v557 = vsub.s32 0, %v556
        %v558 = vrot.slane %v505, %v557
        %560 = vmatprep.subr.bf16.mxu0 0
        %561 = vmatpush1.bf16.msra.mxu0 0
        %562 = vmatprep.subr.bf16.mxu0 0
        %563 = vmatpush1.bf16.msra.mxu0 0
        %564 = vmatprep.subr.bf16.mxu0 0
        %565 = vmatpush1.bf16.msra.mxu0 0
        %566 = vmatprep.subr.bf16.mxu0 0
        %567 = vmatpush1.bf16.msra.mxu0 0
        %568 = vmatprep.subr.bf16.mxu0 0
        %569 = vmatpush1.bf16.msra.mxu0 0
        %570 = vmatprep.subr.bf16.mxu0 0
        %571 = vmatpush1.bf16.msra.mxu0 0
        %572 = vmatprep.subr.bf16.mxu0 0
        %573 = vmatpush1.bf16.msra.mxu0 0
        %574 = vmatprep.subr.bf16.mxu0 0
        %575 = vmatpush1.bf16.msra.mxu0 %v553
        %576 = vmatprep.subr.bf16.mxu0 0
        %577 = vmatpush2.bf16.msra.mxu0 0
        %578 = vmatprep.subr.bf16.mxu0 0
        %579 = vmatpush2.bf16.msra.mxu0 0
        %580 = vmatprep.subr.bf16.mxu0 0
        %581 = vmatpush2.bf16.msra.mxu0 0
        %582 = vmatprep.subr.bf16.mxu0 0
        %583 = vmatpush2.bf16.msra.mxu0 0
        %584 = vmatprep.subr.bf16.mxu0 0
        %585 = vmatpush2.bf16.msra.mxu0 0
        %586 = vmatprep.subr.bf16.mxu0 0
        %587 = vmatpush2.bf16.msra.mxu0 0
        %588 = vmatprep.subr.bf16.mxu0 0
        %589 = vmatpush2.bf16.msra.mxu0 0
        %590 = vmatprep.subr.bf16.mxu0 0
        %591 = vmatpush2.bf16.msra.mxu0 0
        %592 = vmatprep.mubr.bf16.mxu0 0
        %593 = vmatmul.mubr.bf16.gmra.mxu0 %v411
        %v594 = vpop.f32.mrf.mxu0
        %v595 = vadd.f32 %v558, %v594
        %v596 = vpop.f32.mrf.mxu0
        %v597 = vpop.f32.mrf.mxu0
        %v598 = vadd.f32 %v558, %v597
        %v599 = vpop.f32.mrf.mxu0
        %600 = vdwg.mxu0
        %v601 = vtanh.pop %v595
        %v602 = vtanh.pop %v598
        %v603 = vpack.c.bf16 %v602, %v601
        %604 = vmatprep.subr.bf16.mxu0 0
        %605 = vmatpush1.bf16.msra.mxu0 0
        %606 = vmatprep.subr.bf16.mxu0 0
        %607 = vmatpush1.bf16.msra.mxu0 0
        %608 = vmatprep.subr.bf16.mxu0 0
        %609 = vmatpush1.bf16.msra.mxu0 0
        %610 = vmatprep.subr.bf16.mxu0 0
        %611 = vmatpush1.bf16.msra.mxu0 0
        %612 = vmatprep.subr.bf16.mxu0 0
        %613 = vmatpush1.bf16.msra.mxu0 0
        %614 = vmatprep.subr.bf16.mxu0 0
        %615 = vmatpush1.bf16.msra.mxu0 0
        %616 = vmatprep.subr.bf16.mxu0 0
        %617 = vmatpush1.bf16.msra.mxu0 0
        %618 = vmatprep.subr.bf16.mxu0 0
        %619 = vmatpush1.bf16.msra.mxu0 %v603
        %620 = vmatprep.subr.bf16.mxu0 0
        %621 = vmatpush2.bf16.msra.mxu0 0
        %622 = vmatprep.subr.bf16.mxu0 0
        %623 = vmatpush2.bf16.msra.mxu0 0
        %624 = vmatprep.subr.bf16.mxu0 0
        %625 = vmatpush2.bf16.msra.mxu0 0
        %626 = vmatprep.subr.bf16.mxu0 0
        %627 = vmatpush2.bf16.msra.mxu0 0
        %628 = vmatprep.subr.bf16.mxu0 0
        %629 = vmatpush2.bf16.msra.mxu0 0
        %630 = vmatprep.subr.bf16.mxu0 0
        %631 = vmatpush2.bf16.msra.mxu0 0
        %632 = vmatprep.subr.bf16.mxu0 0
        %633 = vmatpush2.bf16.msra.mxu0 0
        %634 = vmatprep.subr.bf16.mxu0 0
        %635 = vmatpush2.bf16.msra.mxu0 0
        %636 = vmatprep.mubr.bf16.mxu0 0
        %637 = vmatmul.mubr.bf16.gmra.mxu0 %v458
        %v638 = vpop.f32.mrf.mxu0
        %v639 = vadd.f32 0.0, %v638
        %v640 = vpop.f32.mrf.mxu0
        %v641 = vpop.f32.mrf.mxu0
        %v642 = vpop.f32.mrf.mxu0
        %643 = vdwg.mxu0
        %v644 = vmul.f32 %v639, 0.0625
        %v645 = vld [vmem:[#allocation8] sm:$0xff]
        %v646 = vld [vmem:[#allocation8 + $0x8] sm:$0xff]
        %v647 = vld [vmem:[#allocation8 + $0x10] sm:$0xff]
        %v648 = vld [vmem:[#allocation8 + $0x18] sm:$0xff]
        %v649 = vld [vmem:[%s6] sm:$0x1]
        %v650 = vpack.c.bf16 %v646, %v645
        %v651 = vpack.c.bf16 %v648, %v647
        %v653 = vsel %vm508, %v603, 0
        %655 = vmatprep.subr.bf16.mxu0 0
        %656 = vmatpush1.bf16.msra.mxu0 0
        %657 = vmatprep.subr.bf16.mxu0 0
        %658 = vmatpush1.bf16.msra.mxu0 0
        %659 = vmatprep.subr.bf16.mxu0 0
        %660 = vmatpush1.bf16.msra.mxu0 0
        %661 = vmatprep.subr.bf16.mxu0 0
        %662 = vmatpush1.bf16.msra.mxu0 0
        %663 = vmatprep.subr.bf16.mxu0 0
        %664 = vmatpush1.bf16.msra.mxu0 0
        %665 = vmatprep.subr.bf16.mxu0 0
        %666 = vmatpush1.bf16.msra.mxu0 0
        %667 = vmatprep.subr.bf16.mxu0 0
        %668 = vmatpush1.bf16.msra.mxu0 %v651
        %669 = vmatprep.subr.bf16.mxu0 0
        %670 = vmatpush1.bf16.msra.mxu0 %v650
        %671 = vmatprep.subr.bf16.mxu0 0
        %672 = vmatpush2.bf16.msra.mxu0 0
        %673 = vmatprep.subr.bf16.mxu0 0
        %674 = vmatpush2.bf16.msra.mxu0 0
        %675 = vmatprep.subr.bf16.mxu0 0
        %676 = vmatpush2.bf16.msra.mxu0 0
        %677 = vmatprep.subr.bf16.mxu0 0
        %678 = vmatpush2.bf16.msra.mxu0 0
        %679 = vmatprep.subr.bf16.mxu0 0
        %680 = vmatpush2.bf16.msra.mxu0 0
        %681 = vmatprep.subr.bf16.mxu0 0
        %682 = vmatpush2.bf16.msra.mxu0 0
        %683 = vmatprep.subr.bf16.mxu0 0
        %684 = vmatpush2.bf16.msra.mxu0 0
        %685 = vmatprep.subr.bf16.mxu0 0
        %686 = vmatpush2.bf16.msra.mxu0 0
        %687 = vmatprep.mubr.bf16.mxu0 0
        %688 = vmatmul.mubr.bf16.gmra.mxu0 %v653
        %v689 = vpop.f32.mrf.mxu0
        %v690 = vadd.f32 0.0, %v689
        %v691 = vpop.f32.mrf.mxu0
        %v692 = vpop.f32.mrf.mxu0
        %v693 = vadd.f32 0.0, %v692
        %v694 = vpop.f32.mrf.mxu0
        %695 = vdwg.mxu0
        %v696 = vpack.c.bf16 %v693, %v690
        %v698 = vlaneseq
        %v699 = vshrl.u32 %v698, 7
        %v700 = vsub.s32 0, %v699
        %v701 = vrot.slane %v649, %v700
        %703 = vmatprep.subr.bf16.mxu0 0
        %704 = vmatpush1.bf16.msra.mxu0 0
        %705 = vmatprep.subr.bf16.mxu0 0
        %706 = vmatpush1.bf16.msra.mxu0 0
        %707 = vmatprep.subr.bf16.mxu0 0
        %708 = vmatpush1.bf16.msra.mxu0 0
        %709 = vmatprep.subr.bf16.mxu0 0
        %710 = vmatpush1.bf16.msra.mxu0 0
        %711 = vmatprep.subr.bf16.mxu0 0
        %712 = vmatpush1.bf16.msra.mxu0 0
        %713 = vmatprep.subr.bf16.mxu0 0
        %714 = vmatpush1.bf16.msra.mxu0 0
        %715 = vmatprep.subr.bf16.mxu0 0
        %716 = vmatpush1.bf16.msra.mxu0 0
        %717 = vmatprep.subr.bf16.mxu0 0
        %718 = vmatpush1.bf16.msra.mxu0 %v696
        %719 = vmatprep.subr.bf16.mxu0 0
        %720 = vmatpush2.bf16.msra.mxu0 0
        %721 = vmatprep.subr.bf16.mxu0 0
        %722 = vmatpush2.bf16.msra.mxu0 0
        %723 = vmatprep.subr.bf16.mxu0 0
        %724 = vmatpush2.bf16.msra.mxu0 0
        %725 = vmatprep.subr.bf16.mxu0 0
        %726 = vmatpush2.bf16.msra.mxu0 0
        %727 = vmatprep.subr.bf16.mxu0 0
        %728 = vmatpush2.bf16.msra.mxu0 0
        %729 = vmatprep.subr.bf16.mxu0 0
        %730 = vmatpush2.bf16.msra.mxu0 0
        %731 = vmatprep.subr.bf16.mxu0 0
        %732 = vmatpush2.bf16.msra.mxu0 0
        %733 = vmatprep.subr.bf16.mxu0 0
        %734 = vmatpush2.bf16.msra.mxu0 0
        %735 = vmatprep.mubr.bf16.mxu0 0
        %736 = vmatmul.mubr.bf16.gmra.mxu0 %v411
        %v737 = vpop.f32.mrf.mxu0
        %v738 = vadd.f32 %v701, %v737
        %v739 = vpop.f32.mrf.mxu0
        %v740 = vpop.f32.mrf.mxu0
        %v741 = vadd.f32 %v701, %v740
        %v742 = vpop.f32.mrf.mxu0
        %743 = vdwg.mxu0
        %v744 = vtanh.pop %v738
        %v745 = vtanh.pop %v741
        %v746 = vpack.c.bf16 %v745, %v744
        %747 = vmatprep.subr.bf16.mxu0 0
        %748 = vmatpush1.bf16.msra.mxu0 0
        %749 = vmatprep.subr.bf16.mxu0 0
        %750 = vmatpush1.bf16.msra.mxu0 0
        %751 = vmatprep.subr.bf16.mxu0 0
        %752 = vmatpush1.bf16.msra.mxu0 0
        %753 = vmatprep.subr.bf16.mxu0 0
        %754 = vmatpush1.bf16.msra.mxu0 0
        %755 = vmatprep.subr.bf16.mxu0 0
        %756 = vmatpush1.bf16.msra.mxu0 0
        %757 = vmatprep.subr.bf16.mxu0 0
        %758 = vmatpush1.bf16.msra.mxu0 0
        %759 = vmatprep.subr.bf16.mxu0 0
        %760 = vmatpush1.bf16.msra.mxu0 0
        %761 = vmatprep.subr.bf16.mxu0 0
        %762 = vmatpush1.bf16.msra.mxu0 %v746
        %763 = vmatprep.subr.bf16.mxu0 0
        %764 = vmatpush2.bf16.msra.mxu0 0
        %765 = vmatprep.subr.bf16.mxu0 0
        %766 = vmatpush2.bf16.msra.mxu0 0
        %767 = vmatprep.subr.bf16.mxu0 0
        %768 = vmatpush2.bf16.msra.mxu0 0
        %769 = vmatprep.subr.bf16.mxu0 0
        %770 = vmatpush2.bf16.msra.mxu0 0
        %771 = vmatprep.subr.bf16.mxu0 0
        %772 = vmatpush2.bf16.msra.mxu0 0
        %773 = vmatprep.subr.bf16.mxu0 0
        %774 = vmatpush2.bf16.msra.mxu0 0
        %775 = vmatprep.subr.bf16.mxu0 0
        %776 = vmatpush2.bf16.msra.mxu0 0
        %777 = vmatprep.subr.bf16.mxu0 0
        %778 = vmatpush2.bf16.msra.mxu0 0
        %779 = vmatprep.mubr.bf16.mxu0 0
        %780 = vmatmul.mubr.bf16.gmra.mxu0 %v458
        %v781 = vpop.f32.mrf.mxu0
        %v782 = vadd.f32 0.0, %v781
        %v783 = vpop.f32.mrf.mxu0
        %v784 = vpop.f32.mrf.mxu0
        %v785 = vpop.f32.mrf.mxu0
        %786 = vdwg.mxu0
        %v787 = vmul.f32 %v782, 0.0625
        %789 = vrot.lane.b32.xlu0 %v644, 32
        %v790 = vpop.permute.xlu0 %789
        %793 = vrot.lane.b32.xlu0 %v787, 64
        %v794 = vpop.permute.xlu0 %793
        %v796 = vsel %vm508, %v500, %v790
        %vm797 = vcmask 523264
        %v798 = vsel %vm797, %v796, %v794
        %vm799 = vcmask 785408
        %v800 = vsel %vm799, %v798, 0.0
        %v801 = vld [vmem:[%s7] sm:$0x1]
        %v802 = vmul.f32 %v800, %v801
        %v803 = vld [vmem:[%s8] sm:$0x1]
        %v804 = vadd.f32 %v802, %v803
        %805 = vst [vmem:[%s393] sm:$0x1] %v804
        %s806 = sand.u32 %s230, 1
        %s807 = scalar_lea.sflag [#allocation4], %s806
        %s808 = sand.u32 %s230, 1
        %s809 = scalar_lea.vmem [#allocation10], %s808
        // Predicated region
        $region73: #{tpu_custom_call.1} parent=55 // pred_check
          %p810 = pneg %p240
        $region74: #{tpu_custom_call.1} parent=55 // pred_check_branch
          %812 = sbr.rel (%p810) target = $region76
        $region75: #{tpu_custom_call.1} parent=55 // pred_region
          %s814 = ssub.s32 16, 16
          %815 = vsyncadd %s807, %s814
          %s816 = smul.addr %s28, 16
          %s817 = scalar_lea.hbm %s9, %s816
          %s819 = sshll.u32 %s809, 4
          %s820 = int_to_ptr.vmem [resolvable:$true] %s819
          %822 = dma.vmem_to_hbm [thread:$0]  %s820, 16, %s817, %s807
        $region76: #{tpu_custom_call.1} parent=55 // pred_fallthru
          _
      $region56: #{tpu_custom_call.1} parent=5 // pred_fallthru
        _
      %p823 = scmp.le.s32.totalorder 2, %s23
      // Predicated region
      $region77: #{tpu_custom_call.1} parent=5 // pred_check
        %p824 = pneg %p823
      $region78: #{tpu_custom_call.1} parent=5 // pred_check_branch
        %826 = sbr.rel (%p824) target = $region80
      $region79: #{tpu_custom_call.1} parent=5 // pred_region
        %s827 = ssub.s32 %s23, 2
        // Predicated region
        $region81: #{tpu_custom_call.1} parent=79 // pred_check
          %p828 = pneg %p246
        $region82: #{tpu_custom_call.1} parent=79 // pred_check_branch
          %830 = sbr.rel (%p828) target = $region84
        $region83: #{tpu_custom_call.1} parent=79 // pred_region
          %s831 = sand.u32 %s231, 1
          %s832 = scalar_lea.sflag [#allocation4], %s831
          %s833 = sand.u32 %s231, 1
          %s834 = scalar_lea.vmem [#allocation10], %s833
          %835 = dma.done %s832, 16
        $region84: #{tpu_custom_call.1} parent=79 // pred_fallthru
          _
      $region80: #{tpu_custom_call.1} parent=5 // pred_fallthru
        _
    $region6: #{tpu_custom_call.1} parent=1 // loop_footer
      %s27 = sadd.s32 1, %s23
    $region7: #{tpu_custom_call.1} parent=1 // loop_footer_branch
      %22 = sbr.rel target = $region3
    $region8: #{tpu_custom_call.1} parent=1 // loop_exit
      _
    %836 = vsyncpa [#allocation3], 1
    %s837 = scalar_lea.sflag [#allocation3], 1
    %838 = vsyncpa %s837, 1
    %839 = vsyncpa [#allocation6], 1
    %840 = vsyncpa [#allocation9], 1
    %841 = vsyncpa [#allocation4], 1
    %s842 = scalar_lea.sflag [#allocation4], 1
    %843 = vsyncpa %s842, 1

</llo_original>
